<compile_context>
chip_gen: v7x
topology: tpu7x:2x2x1
jax: 0.10.0
libtpu: 0.0.40
codegen_flags: <defaults>
</compile_context>

<pallas_src>
import jax
import jax.numpy as jnp
import numpy as np
from jax.experimental import pallas as pl
from jax.experimental.pallas import tpu as pltpu

# ----- module hyper-parameters (small, consistent with the module defaults) -----
B, S, ISIZE = 2, 8, 32
HEAD_DIM = 64
NUM_HEAD = 2                  # max(2, float2odd(ISIZE / HEAD_DIM)) -> 2
ADIM = ISIZE // NUM_HEAD      # 16  (attn_dim)
AHSIZE = ADIM * NUM_HEAD      # 32
HSIZE = ISIZE * 4             # 128 (_hsize)
HPG = HSIZE // NUM_HEAD       # 64  (hidden per group/head)
KS = 5                        # kernel_size
EPS = 1e-6                    # ieps_ln_default
NORM_RESIDUAL = True          # norm_residual_default
# custom_act=False behaviour -> ReLU

# row offsets inside the packed weight slab
R_WI = 0
R_W1A = R_WI + ISIZE          # 32  : grouped-FFN layer-1 weights, bown half
R_W1B = R_W1A + AHSIZE        # 64  : grouped-FFN layer-1 weights, out half
R_W2 = R_W1B + AHSIZE         # 96  : grouped-FFN layer-2 weights (block-diag)
R_WO = R_W2 + HSIZE           # 224 : transo
W_ROWS = R_WO + AHSIZE        # 256
W_COLS = 128

MXU_DTYPE = jnp.bfloat16      # bf16 MXU operands (v6e/v7x native), f32 accumulate


def unicffn_kernel(x_ref, w_ref, v_ref, o_ref):
    x = x_ref[...]                                          # (S, ISIZE) f32

    # ---- packed parameters: static slices (free) ----
    lnw = v_ref[0:1, 0:ISIZE]
    lnb = v_ref[1:2, 0:ISIZE]
    bi = v_ref[2:3, 0:AHSIZE]
    cw = v_ref[3:4, 0:AHSIZE]
    cb = v_ref[4:5, 0:AHSIZE]
    b1 = v_ref[5:6, 0:HSIZE]
    b2 = v_ref[6:7, 0:AHSIZE]
    bo = v_ref[7:8, 0:ISIZE]

    wi = w_ref[R_WI:R_WI + ISIZE, 0:AHSIZE]                 # (32, 32)  bf16
    w1a = w_ref[R_W1A:R_W1A + AHSIZE, 0:HSIZE]              # (32, 128) bf16
    w1b = w_ref[R_W1B:R_W1B + AHSIZE, 0:HSIZE]              # (32, 128) bf16
    w2 = w_ref[R_W2:R_W2 + HSIZE, 0:AHSIZE]                 # (128, 32) bf16
    wo = w_ref[R_WO:R_WO + AHSIZE, 0:ISIZE]                 # (32, 32)  bf16

    # ---- self.normer: LayerNorm(isize), one-pass stats, f32 ----
    inv_i = 1.0 / ISIZE
    s1 = jnp.sum(x, axis=-1, keepdims=True)
    s2 = jnp.sum(x * x, axis=-1, keepdims=True)
    mu = s1 * inv_i
    var = s2 * inv_i - mu * mu
    nx = (x - mu) * jax.lax.rsqrt(var + EPS) * lnw + lnb

    # ---- self.transi: Linear(isize, ahsize) ----
    out = jnp.dot(nx.astype(MXU_DTYPE), wi,
                  preferred_element_type=jnp.float32) + bi  # (S, AHSIZE) f32

    # ---- causal average pool over the previous KS positions ----
    # bow[t] = mean(out[t-KS .. t-1]), zero-padded: KS shifted-row adds.
    row = jax.lax.broadcasted_iota(jnp.int32, (S, AHSIZE), 0)
    acc = jnp.zeros((S, AHSIZE), jnp.float32)
    for k in range(1, KS + 1):
        rolled = pltpu.roll(out, shift=k, axis=0)           # sublane rotation (XLU)
        acc = acc + jnp.where(row >= k, rolled, 0.0)
    bow = acc * (1.0 / KS)

    # ---- self.ctx_normer: LayerNorm over (num_head, attn_dim) == AHSIZE ----
    inv_a = 1.0 / AHSIZE
    bs1 = jnp.sum(bow, axis=-1, keepdims=True)
    bs2 = jnp.sum(bow * bow, axis=-1, keepdims=True)
    bmu = bs1 * inv_a
    bvar = bs2 * inv_a - bmu * bmu
    bown = (bow - bmu) * jax.lax.rsqrt(bvar + EPS) * cw + cb

    # ---- grouped FFN (block-diag fused, no lane concat) + self.transo ----
    h1 = jnp.dot(bown.astype(MXU_DTYPE), w1a, preferred_element_type=jnp.float32)
    h1 = h1 + jnp.dot(out.astype(MXU_DTYPE), w1b, preferred_element_type=jnp.float32)
    h1 = jnp.maximum(h1 + b1, 0.0)
    y = jnp.dot(h1.astype(MXU_DTYPE), w2, preferred_element_type=jnp.float32) + b2
    res = jnp.dot(y.astype(MXU_DTYPE), wo, preferred_element_type=jnp.float32) + bo

    # ---- residual ----
    o_ref[...] = res + (nx if NORM_RESIDUAL else x)


def pack_params(params):
    """One-time host-side packing: a (256,128) bf16 weight slab and an
    (8,128) f32 bias/scale slab -> 2 parameter DMAs, both VMEM-resident."""
    lnw, lnb, wi, bi, cw, cb, w1, b1, w2, b2, wo, bo = params
    w1np = np.asarray(w1)
    w2np = np.asarray(w2)

    wbuf = np.zeros((W_ROWS, W_COLS), np.float32)
    wbuf[R_WI:R_WI + ISIZE, 0:AHSIZE] = np.asarray(wi)
    for h in range(NUM_HEAD):
        # gin order per head = [bown | out]; w1a takes the bown rows, w1b the out rows.
        wbuf[R_W1A + h * ADIM:R_W1A + (h + 1) * ADIM,
             h * HPG:(h + 1) * HPG] = w1np[h, :ADIM, :]
        wbuf[R_W1B + h * ADIM:R_W1B + (h + 1) * ADIM,
             h * HPG:(h + 1) * HPG] = w1np[h, ADIM:, :]
        wbuf[R_W2 + h * HPG:R_W2 + (h + 1) * HPG,
             h * ADIM:(h + 1) * ADIM] = w2np[h]
    wbuf[R_WO:R_WO + AHSIZE, 0:ISIZE] = np.asarray(wo)

    vbuf = np.zeros((8, W_COLS), np.float32)
    vbuf[0, :ISIZE] = np.asarray(lnw)[0]
    vbuf[1, :ISIZE] = np.asarray(lnb)[0]
    vbuf[2, :AHSIZE] = np.asarray(bi)[0]
    vbuf[3, :AHSIZE] = np.asarray(cw)[0]
    vbuf[4, :AHSIZE] = np.asarray(cb)[0]
    vbuf[5, :HSIZE] = np.asarray(b1).reshape(HSIZE)
    vbuf[6, :AHSIZE] = np.asarray(b2).reshape(AHSIZE)
    vbuf[7, :ISIZE] = np.asarray(bo)[0]

    return jnp.asarray(wbuf).astype(MXU_DTYPE), jnp.asarray(vbuf)


def unicffn_pallas(x, packed):
    wbuf, vbuf = packed
    flops = (2 * B * S * (ISIZE * AHSIZE + 2 * AHSIZE * HSIZE
                          + HSIZE * AHSIZE + AHSIZE * ISIZE)
             + B * S * KS * AHSIZE)
    bytes_accessed = (4 * 2 * B * S * ISIZE          # x in + out
                      + 2 * W_ROWS * W_COLS          # bf16 weight slab
                      + 4 * 8 * W_COLS)              # f32 bias/scale slab

    grid_spec = pltpu.PrefetchScalarGridSpec(
        num_scalar_prefetch=0,
        grid=(B,),                                   # batch axis, megacore-parallel
        in_specs=[
            pl.BlockSpec((None, S, ISIZE), lambda b: (b, 0, 0)),
            pl.BlockSpec((W_ROWS, W_COLS), lambda b: (0, 0)),   # resident weights
            pl.BlockSpec((8, W_COLS), lambda b: (0, 0)),        # resident biases
        ],
        out_specs=pl.BlockSpec((None, S, ISIZE), lambda b: (b, 0, 0)),
    )

    # Note: at toy shapes the default scoped-VMEM limit is plenty; set
    # vmem_limit_bytes explicitly if row tiles grow at production sizes.
    out = pl.pallas_call(
        unicffn_kernel,
        out_shape=jax.ShapeDtypeStruct((B, S, ISIZE), jnp.float32),
        grid_spec=grid_spec,
        compiler_params=pltpu.CompilerParams(
            dimension_semantics=("parallel",)),
        cost_estimate=pl.CostEstimate(flops=flops, transcendentals=2 * B * S,
                                      bytes_accessed=bytes_accessed),
    )(x, wbuf, vbuf)
    return out


# ----- pure-JAX reference mirroring the PyTorch forward (states=None) -----
def unicffn_ref(x, params):
    lnw, lnb, wi, bi, cw, cb, w1, b1, w2, b2, wo, bo = params
    mu = x.mean(-1, keepdims=True)
    var = ((x - mu) ** 2).mean(-1, keepdims=True)
    nx = (x - mu) / jnp.sqrt(var + EPS) * lnw[0] + lnb[0]
    out = nx @ wi + bi[0]                                            # (B,S,AHSIZE)
    out4 = out.reshape(B, S, NUM_HEAD, ADIM)
    pad = jnp.zeros((B, KS, NUM_HEAD, ADIM), jnp.float32)
    seq = jnp.concatenate([pad, out4[:, :S - 1]], axis=1)            # (B, KS+S-1, H, A)
    bow4 = jnp.stack([seq[:, t:t + KS].mean(axis=1) for t in range(S)], axis=1)
    bow = bow4.reshape(B, S, AHSIZE)
    bmu = bow.mean(-1, keepdims=True)
    bvar = ((bow - bmu) ** 2).mean(-1, keepdims=True)
    bown = (bow - bmu) / jnp.sqrt(bvar + EPS) * cw[0] + cb[0]
    bown4 = bown.reshape(B, S, NUM_HEAD, ADIM)
    gin = jnp.concatenate([bown4, out4], axis=-1)                    # (B,S,H,2A)
    h1 = jnp.maximum(jnp.einsum('bshi,hio->bsho', gin, w1) + b1[:, 0][None, None], 0.0)
    y = jnp.einsum('bsho,hoa->bsha', h1, w2) + b2[:, 0][None, None]
    y = y.reshape(B, S, AHSIZE)
    res = y @ wo + bo[0]
    return res + (nx if NORM_RESIDUAL else x)


if __name__ == "__main__":
    key = jax.random.PRNGKey(0)
    keys = jax.random.split(key, 16)

    x = jax.random.normal(keys[0], (B, S, ISIZE), jnp.float32)

    # deterministic synthetic parameters
    lnw = 1.0 + 0.1 * jax.random.normal(keys[1], (1, ISIZE), jnp.float32)
    lnb = 0.1 * jax.random.normal(keys[2], (1, ISIZE), jnp.float32)
    wi = 0.05 * jax.random.normal(keys[3], (ISIZE, AHSIZE), jnp.float32)
    bi = 0.05 * jax.random.normal(keys[4], (1, AHSIZE), jnp.float32)
    cw = 1.0 + 0.1 * jax.random.normal(keys[5], (1, AHSIZE), jnp.float32)
    cb = 0.1 * jax.random.normal(keys[6], (1, AHSIZE), jnp.float32)
    w1 = 0.05 * jax.random.normal(keys[7], (NUM_HEAD, 2 * ADIM, HPG), jnp.float32)
    b1 = 0.05 * jax.random.normal(keys[8], (NUM_HEAD, 1, HPG), jnp.float32)
    w2 = 0.05 * jax.random.normal(keys[9], (NUM_HEAD, HPG, ADIM), jnp.float32)
    b2 = 0.05 * jax.random.normal(keys[10], (NUM_HEAD, 1, ADIM), jnp.float32)
    wo = 0.05 * jax.random.normal(keys[11], (AHSIZE, ISIZE), jnp.float32)
    bo = 0.05 * jax.random.normal(keys[12], (1, ISIZE), jnp.float32)

    params = (lnw, lnb, wi, bi, cw, cb, w1, b1, w2, b2, wo, bo)
    packed = pack_params(params)        # one-time host-side prep

    out_kernel = jax.block_until_ready(unicffn_pallas(x, packed))
    out_ref = jax.block_until_ready(unicffn_ref(x, params))

    # bf16 MXU operands (f32 accumulate / f32 LayerNorm stats) -> looser tolerance.
    np.testing.assert_allclose(np.asarray(out_kernel), np.asarray(out_ref),
                               rtol=2e-2, atol=2e-2)
    print("KERNEL_OK")
</pallas_src>

<mosaic_0001>
module attributes {stable_mosaic.version = 11 : i64} {
  func.func @unicffn_kernel(%arg0: i32, %arg1: memref<1x8x32xf32, #tpu.memory_space<vmem>>, %arg2: memref<256x128xbf16, #tpu.memory_space<vmem>>, %arg3: memref<8x128xf32, #tpu.memory_space<vmem>>, %arg4: memref<1x8x32xf32, #tpu.memory_space<vmem>>) attributes {dimension_semantics = [#tpu.dimension_semantics<parallel>], iteration_bounds = array<i64: 2>, scalar_prefetch = 0 : i64, scratch_operands = 0 : i64, tpu.core_type = #tpu.core_type<tc>, window_params = [{transform_indices = @transform_0, window_bounds = array<i64: 1, 8, 32>}, {pipeline_mode = #tpu.pipeline_mode<synchronous>, transform_indices = @transform_1, window_bounds = array<i64: 256, 128>}, {pipeline_mode = #tpu.pipeline_mode<synchronous>, transform_indices = @transform_2, window_bounds = array<i64: 8, 128>}, {transform_indices = @transform_3, window_bounds = array<i64: 1, 8, 32>}]} {
    %c0 = arith.constant 0 : index
    %c0_0 = arith.constant 0 : index
    %c0_1 = arith.constant 0 : index
    %0 = vector.load %arg1[%c0, %c0_0, %c0_1] : memref<1x8x32xf32, #tpu.memory_space<vmem>>, vector<1x8x32xf32>
    %1 = vector.shape_cast %0 : vector<1x8x32xf32> to vector<8x32xf32>
    %c0_2 = arith.constant 0 : index
    %c0_3 = arith.constant 0 : index
    %2 = vector.load %arg3[%c0_2, %c0_3] : memref<8x128xf32, #tpu.memory_space<vmem>>, vector<1x32xf32>
    %c1 = arith.constant 1 : index
    %c0_4 = arith.constant 0 : index
    %3 = vector.load %arg3[%c1, %c0_4] : memref<8x128xf32, #tpu.memory_space<vmem>>, vector<1x32xf32>
    %c2 = arith.constant 2 : index
    %c0_5 = arith.constant 0 : index
    %4 = vector.load %arg3[%c2, %c0_5] : memref<8x128xf32, #tpu.memory_space<vmem>>, vector<1x32xf32>
    %c3 = arith.constant 3 : index
    %c0_6 = arith.constant 0 : index
    %5 = vector.load %arg3[%c3, %c0_6] : memref<8x128xf32, #tpu.memory_space<vmem>>, vector<1x32xf32>
    %c4 = arith.constant 4 : index
    %c0_7 = arith.constant 0 : index
    %6 = vector.load %arg3[%c4, %c0_7] : memref<8x128xf32, #tpu.memory_space<vmem>>, vector<1x32xf32>
    %c5 = arith.constant 5 : index
    %c0_8 = arith.constant 0 : index
    %7 = vector.load %arg3[%c5, %c0_8] : memref<8x128xf32, #tpu.memory_space<vmem>>, vector<1x128xf32>
    %c6 = arith.constant 6 : index
    %c0_9 = arith.constant 0 : index
    %8 = vector.load %arg3[%c6, %c0_9] : memref<8x128xf32, #tpu.memory_space<vmem>>, vector<1x32xf32>
    %c7 = arith.constant 7 : index
    %c0_10 = arith.constant 0 : index
    %9 = vector.load %arg3[%c7, %c0_10] : memref<8x128xf32, #tpu.memory_space<vmem>>, vector<1x32xf32>
    %c0_11 = arith.constant 0 : index
    %c0_12 = arith.constant 0 : index
    %10 = vector.load %arg2[%c0_11, %c0_12] : memref<256x128xbf16, #tpu.memory_space<vmem>>, vector<32x32xbf16>
    %c32 = arith.constant 32 : index
    %c0_13 = arith.constant 0 : index
    %11 = vector.load %arg2[%c32, %c0_13] : memref<256x128xbf16, #tpu.memory_space<vmem>>, vector<32x128xbf16>
    %c64 = arith.constant 64 : index
    %c0_14 = arith.constant 0 : index
    %12 = vector.load %arg2[%c64, %c0_14] : memref<256x128xbf16, #tpu.memory_space<vmem>>, vector<32x128xbf16>
    %c96 = arith.constant 96 : index
    %c0_15 = arith.constant 0 : index
    %13 = vector.load %arg2[%c96, %c0_15] : memref<256x128xbf16, #tpu.memory_space<vmem>>, vector<128x32xbf16>
    %c224 = arith.constant 224 : index
    %c0_16 = arith.constant 0 : index
    %14 = vector.load %arg2[%c224, %c0_16] : memref<256x128xbf16, #tpu.memory_space<vmem>>, vector<32x32xbf16>
    %cst = arith.constant dense<0.000000e+00> : vector<8xf32>
    %15 = vector.multi_reduction <add>, %1, %cst [1] : vector<8x32xf32> to vector<8xf32>
    %16 = vector.shape_cast %15 : vector<8xf32> to vector<8x1xf32>
    %17 = arith.mulf %1, %1 : vector<8x32xf32>
    %cst_17 = arith.constant dense<0.000000e+00> : vector<8xf32>
    %18 = vector.multi_reduction <add>, %17, %cst_17 [1] : vector<8x32xf32> to vector<8xf32>
    %19 = vector.shape_cast %18 : vector<8xf32> to vector<8x1xf32>
    %cst_18 = arith.constant 3.125000e-02 : f32
    %20 = vector.broadcast %cst_18 : f32 to vector<8x1xf32>
    %21 = arith.mulf %16, %20 : vector<8x1xf32>
    %cst_19 = arith.constant 3.125000e-02 : f32
    %22 = vector.broadcast %cst_19 : f32 to vector<8x1xf32>
    %23 = arith.mulf %19, %22 : vector<8x1xf32>
    %24 = arith.mulf %21, %21 : vector<8x1xf32>
    %25 = arith.subf %23, %24 : vector<8x1xf32>
    %26 = vector.broadcast %21 : vector<8x1xf32> to vector<8x32xf32>
    %27 = arith.subf %1, %26 : vector<8x32xf32>
    %cst_20 = arith.constant 9.99999997E-7 : f32
    %28 = vector.broadcast %cst_20 : f32 to vector<8x1xf32>
    %29 = arith.addf %25, %28 : vector<8x1xf32>
    %30 = math.rsqrt %29 : vector<8x1xf32>
    %31 = vector.broadcast %30 : vector<8x1xf32> to vector<8x32xf32>
    %32 = arith.mulf %27, %31 : vector<8x32xf32>
    %33 = vector.broadcast %2 : vector<1x32xf32> to vector<8x32xf32>
    %34 = arith.mulf %32, %33 : vector<8x32xf32>
    %35 = vector.broadcast %3 : vector<1x32xf32> to vector<8x32xf32>
    %36 = arith.addf %34, %35 : vector<8x32xf32>
    %37 = arith.truncf %36 : vector<8x32xf32> to vector<8x32xbf16>
    %cst_21 = arith.constant dense<0.000000e+00> : vector<8x32xf32>
    %38 = tpu.matmul %37, %10, %cst_21 {dimension_numbers = #tpu.dot_dimension_numbers<[1], [0], [0], [1], [0, 0, 1, 1], [], []>} : vector<8x32xbf16>, vector<32x32xbf16>, vector<8x32xf32> -> vector<8x32xf32>
    %39 = vector.broadcast %4 : vector<1x32xf32> to vector<8x32xf32>
    %40 = arith.addf %38, %39 : vector<8x32xf32>
    %41 = tpu.iota {dimensions = array<i32: 0>} : vector<8x32xi32>
    %cst_22 = arith.constant 0.000000e+00 : f32
    %42 = vector.broadcast %cst_22 : f32 to vector<8x32xf32>
    %c1_i32 = arith.constant 1 : i32
    %43 = tpu.dynamic_rotate %40 by %c1_i32 dim 0 : vector<8x32xf32>, i32 -> vector<8x32xf32>
    %c1_i32_23 = arith.constant 1 : i32
    %44 = vector.broadcast %c1_i32_23 : i32 to vector<8x32xi32>
    %45 = arith.cmpi sge, %41, %44 : vector<8x32xi32>
    %cst_24 = arith.constant 0.000000e+00 : f32
    %46 = vector.broadcast %cst_24 : f32 to vector<8x32xf32>
    %47 = arith.select %45, %43, %46 : vector<8x32xi1>, vector<8x32xf32>
    %48 = arith.addf %42, %47 : vector<8x32xf32>
    %c2_i32 = arith.constant 2 : i32
    %49 = tpu.dynamic_rotate %40 by %c2_i32 dim 0 : vector<8x32xf32>, i32 -> vector<8x32xf32>
    %c2_i32_25 = arith.constant 2 : i32
    %50 = vector.broadcast %c2_i32_25 : i32 to vector<8x32xi32>
    %51 = arith.cmpi sge, %41, %50 : vector<8x32xi32>
    %cst_26 = arith.constant 0.000000e+00 : f32
    %52 = vector.broadcast %cst_26 : f32 to vector<8x32xf32>
    %53 = arith.select %51, %49, %52 : vector<8x32xi1>, vector<8x32xf32>
    %54 = arith.addf %48, %53 : vector<8x32xf32>
    %c3_i32 = arith.constant 3 : i32
    %55 = tpu.dynamic_rotate %40 by %c3_i32 dim 0 : vector<8x32xf32>, i32 -> vector<8x32xf32>
    %c3_i32_27 = arith.constant 3 : i32
    %56 = vector.broadcast %c3_i32_27 : i32 to vector<8x32xi32>
    %57 = arith.cmpi sge, %41, %56 : vector<8x32xi32>
    %cst_28 = arith.constant 0.000000e+00 : f32
    %58 = vector.broadcast %cst_28 : f32 to vector<8x32xf32>
    %59 = arith.select %57, %55, %58 : vector<8x32xi1>, vector<8x32xf32>
    %60 = arith.addf %54, %59 : vector<8x32xf32>
    %c4_i32 = arith.constant 4 : i32
    %61 = tpu.dynamic_rotate %40 by %c4_i32 dim 0 : vector<8x32xf32>, i32 -> vector<8x32xf32>
    %c4_i32_29 = arith.constant 4 : i32
    %62 = vector.broadcast %c4_i32_29 : i32 to vector<8x32xi32>
    %63 = arith.cmpi sge, %41, %62 : vector<8x32xi32>
    %cst_30 = arith.constant 0.000000e+00 : f32
    %64 = vector.broadcast %cst_30 : f32 to vector<8x32xf32>
    %65 = arith.select %63, %61, %64 : vector<8x32xi1>, vector<8x32xf32>
    %66 = arith.addf %60, %65 : vector<8x32xf32>
    %c5_i32 = arith.constant 5 : i32
    %67 = tpu.dynamic_rotate %40 by %c5_i32 dim 0 : vector<8x32xf32>, i32 -> vector<8x32xf32>
    %c5_i32_31 = arith.constant 5 : i32
    %68 = vector.broadcast %c5_i32_31 : i32 to vector<8x32xi32>
    %69 = arith.cmpi sge, %41, %68 : vector<8x32xi32>
    %cst_32 = arith.constant 0.000000e+00 : f32
    %70 = vector.broadcast %cst_32 : f32 to vector<8x32xf32>
    %71 = arith.select %69, %67, %70 : vector<8x32xi1>, vector<8x32xf32>
    %72 = arith.addf %66, %71 : vector<8x32xf32>
    %cst_33 = arith.constant 2.000000e-01 : f32
    %73 = vector.broadcast %cst_33 : f32 to vector<8x32xf32>
    %74 = arith.mulf %72, %73 : vector<8x32xf32>
    %cst_34 = arith.constant dense<0.000000e+00> : vector<8xf32>
    %75 = vector.multi_reduction <add>, %74, %cst_34 [1] : vector<8x32xf32> to vector<8xf32>
    %76 = vector.shape_cast %75 : vector<8xf32> to vector<8x1xf32>
    %77 = arith.mulf %74, %74 : vector<8x32xf32>
    %cst_35 = arith.constant dense<0.000000e+00> : vector<8xf32>
    %78 = vector.multi_reduction <add>, %77, %cst_35 [1] : vector<8x32xf32> to vector<8xf32>
    %79 = vector.shape_cast %78 : vector<8xf32> to vector<8x1xf32>
    %cst_36 = arith.constant 3.125000e-02 : f32
    %80 = vector.broadcast %cst_36 : f32 to vector<8x1xf32>
    %81 = arith.mulf %76, %80 : vector<8x1xf32>
    %cst_37 = arith.constant 3.125000e-02 : f32
    %82 = vector.broadcast %cst_37 : f32 to vector<8x1xf32>
    %83 = arith.mulf %79, %82 : vector<8x1xf32>
    %84 = arith.mulf %81, %81 : vector<8x1xf32>
    %85 = arith.subf %83, %84 : vector<8x1xf32>
    %86 = vector.broadcast %81 : vector<8x1xf32> to vector<8x32xf32>
    %87 = arith.subf %74, %86 : vector<8x32xf32>
    %cst_38 = arith.constant 9.99999997E-7 : f32
    %88 = vector.broadcast %cst_38 : f32 to vector<8x1xf32>
    %89 = arith.addf %85, %88 : vector<8x1xf32>
    %90 = math.rsqrt %89 : vector<8x1xf32>
    %91 = vector.broadcast %90 : vector<8x1xf32> to vector<8x32xf32>
    %92 = arith.mulf %87, %91 : vector<8x32xf32>
    %93 = vector.broadcast %5 : vector<1x32xf32> to vector<8x32xf32>
    %94 = arith.mulf %92, %93 : vector<8x32xf32>
    %95 = vector.broadcast %6 : vector<1x32xf32> to vector<8x32xf32>
    %96 = arith.addf %94, %95 : vector<8x32xf32>
    %97 = arith.truncf %96 : vector<8x32xf32> to vector<8x32xbf16>
    %cst_39 = arith.constant dense<0.000000e+00> : vector<8x128xf32>
    %98 = tpu.matmul %97, %11, %cst_39 {dimension_numbers = #tpu.dot_dimension_numbers<[1], [0], [0], [1], [0, 0, 1, 1], [], []>} : vector<8x32xbf16>, vector<32x128xbf16>, vector<8x128xf32> -> vector<8x128xf32>
    %99 = arith.truncf %40 : vector<8x32xf32> to vector<8x32xbf16>
    %cst_40 = arith.constant dense<0.000000e+00> : vector<8x128xf32>
    %100 = tpu.matmul %99, %12, %cst_40 {dimension_numbers = #tpu.dot_dimension_numbers<[1], [0], [0], [1], [0, 0, 1, 1], [], []>} : vector<8x32xbf16>, vector<32x128xbf16>, vector<8x128xf32> -> vector<8x128xf32>
    %101 = arith.addf %98, %100 : vector<8x128xf32>
    %102 = vector.broadcast %7 : vector<1x128xf32> to vector<8x128xf32>
    %103 = arith.addf %101, %102 : vector<8x128xf32>
    %cst_41 = arith.constant 0.000000e+00 : f32
    %104 = vector.broadcast %cst_41 : f32 to vector<8x128xf32>
    %105 = arith.maximumf %103, %104 : vector<8x128xf32>
    %106 = arith.truncf %105 : vector<8x128xf32> to vector<8x128xbf16>
    %cst_42 = arith.constant dense<0.000000e+00> : vector<8x32xf32>
    %107 = tpu.matmul %106, %13, %cst_42 {dimension_numbers = #tpu.dot_dimension_numbers<[1], [0], [0], [1], [0, 0, 1, 1], [], []>} : vector<8x128xbf16>, vector<128x32xbf16>, vector<8x32xf32> -> vector<8x32xf32>
    %108 = vector.broadcast %8 : vector<1x32xf32> to vector<8x32xf32>
    %109 = arith.addf %107, %108 : vector<8x32xf32>
    %110 = arith.truncf %109 : vector<8x32xf32> to vector<8x32xbf16>
    %cst_43 = arith.constant dense<0.000000e+00> : vector<8x32xf32>
    %111 = tpu.matmul %110, %14, %cst_43 {dimension_numbers = #tpu.dot_dimension_numbers<[1], [0], [0], [1], [0, 0, 1, 1], [], []>} : vector<8x32xbf16>, vector<32x32xbf16>, vector<8x32xf32> -> vector<8x32xf32>
    %112 = vector.broadcast %9 : vector<1x32xf32> to vector<8x32xf32>
    %113 = arith.addf %111, %112 : vector<8x32xf32>
    %114 = arith.addf %113, %36 : vector<8x32xf32>
    %c0_44 = arith.constant 0 : index
    %c0_45 = arith.constant 0 : index
    %c0_46 = arith.constant 0 : index
    %115 = vector.load %arg4[%c0_44, %c0_45, %c0_46] : memref<1x8x32xf32, #tpu.memory_space<vmem>>, vector<1x8x32xf32>
    %116 = vector.shape_cast %115 : vector<1x8x32xf32> to vector<8x32xf32>
    %117 = vector.shape_cast %114 : vector<8x32xf32> to vector<1x8x32xf32>
    tpu.vector_store %arg4[%c0_44, %c0_45, %c0_46], %117 {strides = array<i32>} : memref<1x8x32xf32, #tpu.memory_space<vmem>>, vector<1x8x32xf32>,
    return
  }
  func.func @transform_0(%arg0: i32) -> (i32, i32, i32) {
    %c0_i32 = arith.constant 0 : i32
    %c0_i32_0 = arith.constant 0 : i32
    %c0_i32_1 = arith.constant 0 : i32
    return %arg0, %c0_i32, %c0_i32_0 : i32, i32, i32
  }
  func.func @transform_1(%arg0: i32) -> (i32, i32) {
    %c0_i32 = arith.constant 0 : i32
    %c0_i32_0 = arith.constant 0 : i32
    %c0_i32_1 = arith.constant 0 : i32
    return %c0_i32, %c0_i32_0 : i32, i32
  }
  func.func @transform_2(%arg0: i32) -> (i32, i32) {
    %c0_i32 = arith.constant 0 : i32
    %c0_i32_0 = arith.constant 0 : i32
    %c0_i32_1 = arith.constant 0 : i32
    return %c0_i32, %c0_i32_0 : i32, i32
  }
  func.func @transform_3(%arg0: i32) -> (i32, i32, i32) {
    %c0_i32 = arith.constant 0 : i32
    %c0_i32_0 = arith.constant 0 : i32
    %c0_i32_1 = arith.constant 0 : i32
    return %arg0, %c0_i32, %c0_i32_0 : i32, i32, i32
  }
}

</mosaic_0001>

<llo_original>
// kernel: tpu_custom_call.1
$region0: #{tpu_custom_call.1}
  #allocation0 [shape = 'u32[]', space=smem, size = 0x4, offset = 0x4, fixed_abs, tag = 'smem constant byte address 0x4 - core index']
  #allocation1 [shape = 'u32[144,128]{1,0:T(1,128)}', space=vmem, size = 0x12000, scoped, tag = 'internal scratch']
  %s0 = inlined_call_operand.hbm [shape: f32[2,8,32], index: 0, kind: input, shape index: {}]
  %s1 = inlined_call_operand.hbm [shape: bf16[256,128], index: 1, kind: input, shape index: {}]
  %s2 = inlined_call_operand.hbm [shape: f32[8,128], index: 2, kind: input, shape index: {}]
  %s3 = inlined_call_operand.hbm [shape: f32[2,8,32], index: 3, kind: output, shape index: {}]
  %s4 = sld [smem:[#allocation0]]
  $region57: #{tpu_custom_call.1} parent=0
    _
  %s6 = ssub.s32 1, %s4
  %s7 = scalar_select 0, %s6, %s4
  $region1: #{tpu_custom_call.1} parent=0
    #allocation2 [shape = 'u8[8192]{0}', space=vmem, size = 0x2000, scoped, tag = 'input window, operand 0']
    #allocation3 [shape = 's32[2]{0}', space=sflag, size = 0x8, scoped, tag = 'scoped memory for tpu_custom_call.1']
    #allocation4 [shape = 's32[2]{0}', space=sflag, size = 0x8, scoped, tag = 'scoped memory for tpu_custom_call.1']
    #allocation5 [shape = 'u8[65536]{0}', space=vmem, size = 0x10000, scoped, tag = 'input window, operand 1, single buffered']
    #allocation6 [shape = 's32[1]{0}', space=sflag, size = 0x4, scoped, tag = 'scoped memory for tpu_custom_call.1']
    #allocation7 [shape = 'u8[4096]{0}', space=vmem, size = 0x1000, scoped, tag = 'input window, operand 2, single buffered']
    #allocation8 [shape = 'u8[8192]{0}', space=vmem, size = 0x2000, scoped, tag = 'output window, operand 0']
    %8 = vsyncpa [#allocation3], 0
    %s9 = scalar_lea.sflag [#allocation3], 1
    %10 = vsyncpa %s9, 0
    %11 = vsyncpa [#allocation6], 0
    %12 = vsyncpa [#allocation4], 0
    %s13 = scalar_lea.sflag [#allocation4], 1
    %14 = vsyncpa %s13, 0
    loop: start=0, step=1, limit=4
    $region2: #{tpu_custom_call.1} parent=1 // loop_pre_header
      _
    $region3: #{tpu_custom_call.1} parent=1 // loop_header
      %s16 = sphi 0, %s20
      %p17 = scmp.ge.s32.totalorder %s16, 4
      %s26 = sphi 0, %s28
      %s29 = sphi 0, %s26
      %s30 = sphi 0, %s29
      %s46 = sphi 0, %s30
      %s50 = sphi 0, %s50
      %s52 = sphi 0, %s50
      %s53 = sphi 0, %s52
      %s67 = sphi 0, %s53
      %s71 = sphi 0, %s71
      %s73 = sphi 0, %s71
      %s74 = sphi 0, %s73
      %s88 = sphi 0, %s74
      %s94 = sphi 0, %s96
      %s97 = sphi 0, %s94
      %s98 = sphi 0, %s97
      %s114 = sphi 0, %s98
    $region4: #{tpu_custom_call.1} parent=1 // loop_header_branch
      %19 = sbr.rel (%p17) target = $region8
    $region5: #{tpu_custom_call.1} parent=1 // loop_body
      %s21 = ssub.s32 %s16, 1
      %s22 = ssub.s32 %s16, 2
      %s23 = sadd.s32 %s16, 1
      %s24 = ssub.s32 %s16, %s23
      %p25 = scmp.eq.s32.totalorder %s24, 0
      %s27 = sadd.s32 %s26, 1
      %s28 = scalar_select %p25, %s26, %s27
      %p31 = pneg %p25
      %p32 = scmp.eq.s32.totalorder %s16, 1
      %p33 = por %p31, %p32
      %p34 = scmp.ne.s32.totalorder %s26, %s29
      %p35 = scmp.eq.s32.totalorder %s16, 0
      %p36 = por %p34, %p35
      %p37 = scmp.ne.s32.totalorder %s26, %s29
      %p38 = scmp.eq.s32.totalorder %s21, 1
      %p39 = por %p37, %p38
      %p40 = scmp.ne.s32.totalorder %s29, %s30
      %p41 = scmp.eq.s32.totalorder %s21, 0
      %p42 = por %p40, %p41
      %p43 = scmp.ne.s32.totalorder %s29, %s30
      %p44 = scmp.eq.s32.totalorder %s22, 1
      %p45 = por %p43, %p44
      %p47 = scmp.ne.s32.totalorder %s30, %s46
      %p48 = scmp.eq.s32.totalorder %s22, 0
      %p49 = por %p47, %p48
      %s51 = sadd.s32 %s50, 1
      %p54 = scmp.eq.s32.totalorder %s16, 1
      %p55 = scmp.ne.s32.totalorder %s50, %s52
      %p56 = scmp.eq.s32.totalorder %s16, 0
      %p57 = por %p55, %p56
      %p58 = scmp.ne.s32.totalorder %s50, %s52
      %p59 = scmp.eq.s32.totalorder %s21, 1
      %p60 = por %p58, %p59
      %p61 = scmp.ne.s32.totalorder %s52, %s53
      %p62 = scmp.eq.s32.totalorder %s21, 0
      %p63 = por %p61, %p62
      %p64 = scmp.ne.s32.totalorder %s52, %s53
      %p65 = scmp.eq.s32.totalorder %s22, 1
      %p66 = por %p64, %p65
      %p68 = scmp.ne.s32.totalorder %s53, %s67
      %p69 = scmp.eq.s32.totalorder %s22, 0
      %p70 = por %p68, %p69
      %s72 = sadd.s32 %s71, 1
      %p75 = scmp.eq.s32.totalorder %s16, 1
      %p76 = scmp.ne.s32.totalorder %s71, %s73
      %p77 = scmp.eq.s32.totalorder %s16, 0
      %p78 = por %p76, %p77
      %p79 = scmp.ne.s32.totalorder %s71, %s73
      %p80 = scmp.eq.s32.totalorder %s21, 1
      %p81 = por %p79, %p80
      %p82 = scmp.ne.s32.totalorder %s73, %s74
      %p83 = scmp.eq.s32.totalorder %s21, 0
      %p84 = por %p82, %p83
      %p85 = scmp.ne.s32.totalorder %s73, %s74
      %p86 = scmp.eq.s32.totalorder %s22, 1
      %p87 = por %p85, %p86
      %p89 = scmp.ne.s32.totalorder %s74, %s88
      %p90 = scmp.eq.s32.totalorder %s22, 0
      %p91 = por %p89, %p90
      %s92 = ssub.s32 %s16, %s23
      %p93 = scmp.eq.s32.totalorder %s92, 0
      %s95 = sadd.s32 %s94, 1
      %s96 = scalar_select %p93, %s94, %s95
      %p99 = pneg %p93
      %p100 = scmp.eq.s32.totalorder %s16, 1
      %p101 = por %p99, %p100
      %p102 = scmp.ne.s32.totalorder %s94, %s97
      %p103 = scmp.eq.s32.totalorder %s16, 0
      %p104 = por %p102, %p103
      %p105 = scmp.ne.s32.totalorder %s94, %s97
      %p106 = scmp.eq.s32.totalorder %s21, 1
      %p107 = por %p105, %p106
      %p108 = scmp.ne.s32.totalorder %s97, %s98
      %p109 = scmp.eq.s32.totalorder %s21, 0
      %p110 = por %p108, %p109
      %p111 = scmp.ne.s32.totalorder %s97, %s98
      %p112 = scmp.eq.s32.totalorder %s22, 1
      %p113 = por %p111, %p112
      %p115 = scmp.ne.s32.totalorder %s98, %s114
      %p116 = scmp.eq.s32.totalorder %s22, 0
      %p117 = por %p115, %p116
      %p118 = scmp.le.s32.totalorder 1, %s16
      %p119 = scmp.lt.s32.totalorder %s16, 3
      %p120 = pnand %p118, %p119
      %p121 = pneg %p120
      // Predicated region
      $region9: #{tpu_custom_call.1} parent=5 // pred_check
        _
      $region10: #{tpu_custom_call.1} parent=5 // pred_check_branch
        %123 = sbr.rel (%p120) target = $region12
      $region11: #{tpu_custom_call.1} parent=5 // pred_region
        %s124 = ssub.s32 %s16, 1
        // Predicated region
        $region13: #{tpu_custom_call.1} parent=11 // pred_check
          %p125 = pneg %p63
        $region14: #{tpu_custom_call.1} parent=11 // pred_check_branch
          %127 = sbr.rel (%p125) target = $region16
        $region15: #{tpu_custom_call.1} parent=11 // pred_region
          %s129 = ssub.s32 2048, 2048
          %130 = vsyncadd [#allocation6], %s129
          %s131 = sshll.u32 [#allocation5], 4
          %s132 = int_to_ptr.vmem [resolvable:$true] %s131
          %137 = dma.hbm_to_vmem [thread:$0]  %s1, 2048, %s132, [#allocation6], 64, 64, 4
        $region16: #{tpu_custom_call.1} parent=11 // pred_fallthru
          _
        // Predicated region
        $region17: #{tpu_custom_call.1} parent=11 // pred_check
          %p138 = pneg %p84
        $region18: #{tpu_custom_call.1} parent=11 // pred_check_branch
          %140 = sbr.rel (%p138) target = $region20
        $region19: #{tpu_custom_call.1} parent=11 // pred_region
          %s142 = ssub.s32 128, 128
          %143 = vsyncadd [#allocation6], %s142
          %s145 = sshll.u32 [#allocation7], 4
          %s146 = int_to_ptr.vmem [resolvable:$true] %s145
          %148 = dma.hbm_to_vmem [thread:$0]  %s2, 128, %s146, [#allocation6]
        $region20: #{tpu_custom_call.1} parent=11 // pred_fallthru
          _
      $region12: #{tpu_custom_call.1} parent=5 // pred_fallthru
        _
      %p149 = scmp.lt.s32.totalorder %s16, 2
      // Predicated region
      $region21: #{tpu_custom_call.1} parent=5 // pred_check
        %p150 = pneg %p149
      $region22: #{tpu_custom_call.1} parent=5 // pred_check_branch
        %152 = sbr.rel (%p150) target = $region24
      $region23: #{tpu_custom_call.1} parent=5 // pred_region
        // Predicated region
        $region25: #{tpu_custom_call.1} parent=23 // pred_check
          %p153 = pneg %p36
        $region26: #{tpu_custom_call.1} parent=23 // pred_check_branch
          %155 = sbr.rel (%p153) target = $region28
        $region27: #{tpu_custom_call.1} parent=23 // pred_region
          %s156 = sand.u32 %s26, 1
          %s157 = scalar_lea.sflag [#allocation3], %s156
          %s158 = sand.u32 %s26, 1
          %s159 = smul.addr %s158, 8
          %s160 = scalar_lea.vmem [#allocation2], %s159
          %s162 = ssub.s32 128, 128
          %163 = vsyncadd %s157, %s162
          %s164 = smul.addr %s16, 128
          %s165 = scalar_lea.hbm %s0, %s164
          %s167 = sshll.u32 %s160, 4
          %s168 = int_to_ptr.vmem [resolvable:$true] %s167
          %170 = dma.hbm_to_vmem [thread:$0]  %s165, 128, %s168, %s157
        $region28: #{tpu_custom_call.1} parent=23 // pred_fallthru
          _
      $region24: #{tpu_custom_call.1} parent=5 // pred_fallthru
        _
      %p171 = scmp.le.s32.totalorder 1, %s16
      %p172 = scmp.lt.s32.totalorder %s16, 3
      %p173 = pnand %p171, %p172
      %p174 = pneg %p173
      // Predicated region
      $region29: #{tpu_custom_call.1} parent=5 // pred_check
        _
      $region30: #{tpu_custom_call.1} parent=5 // pred_check_branch
        %176 = sbr.rel (%p173) target = $region32
      $region31: #{tpu_custom_call.1} parent=5 // pred_region
        %s177 = ssub.s32 %s16, 1
        %s178 = sand.u32 %s29, 1
        %s179 = scalar_lea.sflag [#allocation3], %s178
        %s180 = sand.u32 %s29, 1
        %s181 = smul.addr %s180, 8
        %s182 = scalar_lea.vmem [#allocation2], %s181
        // Predicated region
        $region33: #{tpu_custom_call.1} parent=31 // pred_check
          %p183 = pneg %p42
        $region34: #{tpu_custom_call.1} parent=31 // pred_check_branch
          %185 = sbr.rel (%p183) target = $region36
        $region35: #{tpu_custom_call.1} parent=31 // pred_region
          %186 = dma.done %s179, 128
        $region36: #{tpu_custom_call.1} parent=31 // pred_fallthru
          _
        // Predicated region
        $region37: #{tpu_custom_call.1} parent=31 // pred_check
          %p187 = pneg %p63
        $region38: #{tpu_custom_call.1} parent=31 // pred_check_branch
          %189 = sbr.rel (%p187) target = $region40
        $region39: #{tpu_custom_call.1} parent=31 // pred_region
          %190 = dma.done [#allocation6], 2048
        $region40: #{tpu_custom_call.1} parent=31 // pred_fallthru
          _
        // Predicated region
        $region41: #{tpu_custom_call.1} parent=31 // pred_check
          %p191 = pneg %p84
        $region42: #{tpu_custom_call.1} parent=31 // pred_check_branch
          %193 = sbr.rel (%p191) target = $region44
        $region43: #{tpu_custom_call.1} parent=31 // pred_region
          %194 = dma.done [#allocation6], 128
        $region44: #{tpu_custom_call.1} parent=31 // pred_fallthru
          _
        %s195 = sand.u32 %s29, 1
        %s196 = scalar_lea.sflag [#allocation3], %s195
        %s197 = sand.u32 %s29, 1
        %s198 = smul.addr %s197, 8
        %s199 = scalar_lea.vmem [#allocation2], %s198
        %p200 = pneg %p42
        %p201 = pneg %p39
        %p202 = pneg %p63
        %p203 = pneg %p60
        %p204 = pneg %p84
        %p205 = pneg %p81
        %p206 = pneg %p110
        %p207 = pneg %p107
        %s208 = sand.u32 %s97, 1
        %s209 = scalar_lea.sflag [#allocation4], %s208
        %s210 = sand.u32 %s97, 1
        %s211 = smul.addr %s210, 8
        %s212 = scalar_lea.vmem [#allocation8], %s211
        %v214 = vld [vmem:[%s182] sm:$0xff]
        %v215 = vld [vmem:[#allocation7] sm:$0x1]
        %v216 = vld [vmem:[#allocation7 + $0x1] sm:$0x1]
        %v217 = vld [vmem:[#allocation7 + $0x2] sm:$0x1]
        %v218 = vld [vmem:[#allocation7 + $0x3] sm:$0x1]
        %v219 = vld [vmem:[#allocation7 + $0x4] sm:$0x1]
        %v220 = vld [vmem:[#allocation7 + $0x5] sm:$0x1]
        %v221 = vld [vmem:[#allocation7 + $0x6] sm:$0x1]
        %v222 = vld [vmem:[#allocation7 + $0x7] sm:$0x1]
        %v223 = vld [vmem:[#allocation5] sm:$0xf]
        %v224 = vld [vmem:[#allocation5 + $0x4] sm:$0xf]
        %v225 = vld [vmem:[#allocation5 + $0x8] sm:$0xf]
        %v226 = vld [vmem:[#allocation5 + $0xc] sm:$0xf]
        %v227 = vld [vmem:[#allocation5 + $0x10] sm:$0xf]
        %v228 = vld [vmem:[#allocation5 + $0x14] sm:$0xf]
        %v229 = vld [vmem:[#allocation5 + $0x18] sm:$0xf]
        %v230 = vld [vmem:[#allocation5 + $0x1c] sm:$0xf]
        %v231 = vld [vmem:[#allocation5 + $0x20] sm:$0xf]
        %v232 = vld [vmem:[#allocation5 + $0x24] sm:$0xf]
        %v233 = vld [vmem:[#allocation5 + $0x28] sm:$0xf]
        %v234 = vld [vmem:[#allocation5 + $0x2c] sm:$0xf]
        %v235 = vld [vmem:[#allocation5 + $0x30] sm:$0xf]
        %v236 = vld [vmem:[#allocation5 + $0x34] sm:$0xf]
        %v237 = vld [vmem:[#allocation5 + $0x38] sm:$0xf]
        %v238 = vld [vmem:[#allocation5 + $0x3c] sm:$0xf]
        %v239 = vld [vmem:[#allocation5 + $0x40] sm:$0xf]
        %v240 = vld [vmem:[#allocation5 + $0x44] sm:$0xf]
        %v241 = vld [vmem:[#allocation5 + $0x48] sm:$0xf]
        %v242 = vld [vmem:[#allocation5 + $0x4c] sm:$0xf]
        %v243 = vld [vmem:[#allocation5 + $0x50] sm:$0xf]
        %v244 = vld [vmem:[#allocation5 + $0x54] sm:$0xf]
        %v245 = vld [vmem:[#allocation5 + $0x58] sm:$0xf]
        %v246 = vld [vmem:[#allocation5 + $0x5c] sm:$0xf]
        %v247 = vld [vmem:[#allocation5 + $0x60] sm:$0xf]
        %v248 = vld [vmem:[#allocation5 + $0x64] sm:$0xf]
        %v249 = vld [vmem:[#allocation5 + $0x68] sm:$0xf]
        %v250 = vld [vmem:[#allocation5 + $0x6c] sm:$0xf]
        %v251 = vld [vmem:[#allocation5 + $0x70] sm:$0xf]
        %v252 = vld [vmem:[#allocation5 + $0x74] sm:$0xf]
        %v253 = vld [vmem:[#allocation5 + $0x78] sm:$0xf]
        %v254 = vld [vmem:[#allocation5 + $0x7c] sm:$0xf]
        %vm255 = vcmask 261120
        %v256 = vsel %vm255, %v214, 0.0
        %257 = vadd.xlane.f32.xlu0 %v256
        %v258 = vpop.xlane.xlu0 %257
        %v259 = vmul.f32 %v214, %v214
        %v260 = vsel %vm255, %v259, 0.0
        %261 = vadd.xlane.f32.xlu0 %v260
        %v262 = vpop.xlane.xlu0 %261
        %v263 = vmul.f32 %v258, 0.03125
        %v264 = vmul.f32 %v262, 0.03125
        %v265 = vmul.f32 %v263, %v263
        %v266 = vsub.f32 %v264, %v265
        %v267 = vsub.f32 %v214, %v263
        %v268 = vadd.f32 %v266, 1e-06
        %v269 = vrsqrt.pop %v268
        %v270 = vmul.f32 %v267, %v269
        %v271 = vlaneseq
        %v272 = vshrl.u32 %v271, 7
        %v273 = vsub.s32 0, %v272
        %v274 = vrot.slane %v215, %v273
        %v275 = vmul.f32 %v270, %v274
        %v276 = vlaneseq
        %v277 = vshrl.u32 %v276, 7
        %v278 = vsub.s32 0, %v277
        %v279 = vrot.slane %v216, %v278
        %v280 = vadd.f32 %v275, %v279
        %v281 = vpack.c.bf16 %v280, %v280
        %v282 = vlaneseq
        %v283 = vshrl.u32 %v282, 7
        %v284 = vsub.s32 0, %v283
        %v285 = vrot.slane %v217, %v284
        %v290 = vunpack.c.l.b16 %v223
        %v291 = vunpack.c.l.b16 %v224
        %v292 = vunpack.c.l.b16 %v225
        %v293 = vunpack.c.l.b16 %v226
        %v294 = vpack.c.b16 %v291, %v290
        %v295 = vpack.c.b16 %v293, %v292
        %v299 = vsel %vm255, %v281, 0
        %301 = vmatprep.subr.bf16.mxu0 0
        %302 = vmatpush1.bf16.msra.mxu0 %v294
        %303 = vmatprep.subr.bf16.mxu0 0
        %304 = vmatpush1.bf16.msra.mxu0 %v295
        %305 = vmatprep.subr.bf16.mxu0 0
        %306 = vmatpush1.bf16.msra.mxu0 0
        %307 = vmatprep.subr.bf16.mxu0 0
        %308 = vmatpush1.bf16.msra.mxu0 0
        %309 = vmatprep.subr.bf16.mxu0 0
        %310 = vmatpush1.bf16.msra.mxu0 0
        %311 = vmatprep.subr.bf16.mxu0 0
        %312 = vmatpush1.bf16.msra.mxu0 0
        %313 = vmatprep.subr.bf16.mxu0 0
        %314 = vmatpush1.bf16.msra.mxu0 0
        %315 = vmatprep.subr.bf16.mxu0 0
        %316 = vmatpush1.bf16.msra.mxu0 0
        %317 = vmatprep.subr.bf16.mxu0 0
        %318 = vmatpush1.bf16.msra.mxu0 0
        %319 = vmatprep.subr.bf16.mxu0 0
        %320 = vmatpush1.bf16.msra.mxu0 0
        %321 = vmatprep.subr.bf16.mxu0 0
        %322 = vmatpush1.bf16.msra.mxu0 0
        %323 = vmatprep.subr.bf16.mxu0 0
        %324 = vmatpush1.bf16.msra.mxu0 0
        %325 = vmatprep.subr.bf16.mxu0 0
        %326 = vmatpush1.bf16.msra.mxu0 0
        %327 = vmatprep.subr.bf16.mxu0 0
        %328 = vmatpush1.bf16.msra.mxu0 0
        %329 = vmatprep.subr.bf16.mxu0 0
        %330 = vmatpush1.bf16.msra.mxu0 0
        %331 = vmatprep.subr.bf16.mxu0 0
        %332 = vmatpush1.bf16.msra.mxu0 0
        %333 = vmatprep.mubr.bf16.mxu0 0
        %334 = vmatmul.mubr.bf16.gmra.mrb[0].mxu0 %v299
        %v335 = vpop.f32.mrb[0].mxu0
        %v336 = vadd.f32 %v285, %v335
        %v337 = vpop.f32.mrb[0].mxu0
        %v338 = vpop.f32.mrb[0].mxu0
        %v339 = vpop.f32.mrb[0].mxu0
        %340 = vdwg.mxu0
        %v341 = vlaneseq
        %v342 = vshrl.u32 %v341, 7
        %v343 = vrot.slane %v336, 7
        %vm344 = vcmp.ge.s32.totalorder %v342, 1
        %v345 = vsel %vm344, %v343, 0.0
        %v346 = vadd.f32 %v345, 0.0
        %v347 = vrot.slane %v336, 6
        %vm348 = vcmp.ge.s32.totalorder %v342, 2
        %v349 = vsel %vm348, %v347, 0.0
        %v350 = vadd.f32 %v346, %v349
        %v351 = vrot.slane %v336, 5
        %vm352 = vcmp.ge.s32.totalorder %v342, 3
        %v353 = vsel %vm352, %v351, 0.0
        %v354 = vadd.f32 %v350, %v353
        %v355 = vrot.slane %v336, 4
        %vm356 = vcmp.ge.s32.totalorder %v342, 4
        %v357 = vsel %vm356, %v355, 0.0
        %v358 = vadd.f32 %v354, %v357
        %v359 = vrot.slane %v336, 3
        %vm360 = vcmp.ge.s32.totalorder %v342, 5
        %v361 = vsel %vm360, %v359, 0.0
        %v362 = vadd.f32 %v358, %v361
        %v363 = vmul.f32 %v362, 0.2
        %v364 = vsel %vm255, %v363, 0.0
        %365 = vadd.xlane.f32.xlu0 %v364
        %v366 = vpop.xlane.xlu0 %365
        %v367 = vmul.f32 %v363, %v363
        %v368 = vsel %vm255, %v367, 0.0
        %369 = vadd.xlane.f32.xlu0 %v368
        %v370 = vpop.xlane.xlu0 %369
        %v371 = vmul.f32 %v366, 0.03125
        %v372 = vmul.f32 %v370, 0.03125
        %v373 = vmul.f32 %v371, %v371
        %v374 = vsub.f32 %v372, %v373
        %v375 = vsub.f32 %v363, %v371
        %v376 = vadd.f32 %v374, 1e-06
        %v377 = vrsqrt.pop %v376
        %v378 = vmul.f32 %v375, %v377
        %v379 = vlaneseq
        %v380 = vshrl.u32 %v379, 7
        %v381 = vsub.s32 0, %v380
        %v382 = vrot.slane %v218, %v381
        %v383 = vmul.f32 %v378, %v382
        %v384 = vlaneseq
        %v385 = vshrl.u32 %v384, 7
        %v386 = vsub.s32 0, %v385
        %v387 = vrot.slane %v219, %v386
        %v388 = vadd.f32 %v383, %v387
        %v389 = vpack.c.bf16 %v388, %v388
        %v390 = vpack.c.bf16 %v336, %v336
        %v395 = vunpack.c.l.b16 %v231
        %v396 = vunpack.c.l.b16 %v232
        %v397 = vunpack.c.l.b16 %v233
        %v398 = vunpack.c.l.b16 %v234
        %v399 = vpack.c.b16 %v396, %v395
        %v400 = vpack.c.b16 %v398, %v397
        %v404 = vsel %vm255, %v390, 0
        %406 = vmatprep.subr.bf16.mxu0 0
        %407 = vmatpush1.bf16.msra.mxu0 %v399
        %408 = vmatprep.subr.bf16.mxu0 0
        %409 = vmatpush1.bf16.msra.mxu0 %v400
        %410 = vmatprep.subr.bf16.mxu0 0
        %411 = vmatpush1.bf16.msra.mxu0 0
        %412 = vmatprep.subr.bf16.mxu0 0
        %413 = vmatpush1.bf16.msra.mxu0 0
        %414 = vmatprep.subr.bf16.mxu0 0
        %415 = vmatpush1.bf16.msra.mxu0 0
        %416 = vmatprep.subr.bf16.mxu0 0
        %417 = vmatpush1.bf16.msra.mxu0 0
        %418 = vmatprep.subr.bf16.mxu0 0
        %419 = vmatpush1.bf16.msra.mxu0 0
        %420 = vmatprep.subr.bf16.mxu0 0
        %421 = vmatpush1.bf16.msra.mxu0 0
        %422 = vmatprep.subr.bf16.mxu0 0
        %423 = vmatpush1.bf16.msra.mxu0 0
        %424 = vmatprep.subr.bf16.mxu0 0
        %425 = vmatpush1.bf16.msra.mxu0 0
        %426 = vmatprep.subr.bf16.mxu0 0
        %427 = vmatpush1.bf16.msra.mxu0 0
        %428 = vmatprep.subr.bf16.mxu0 0
        %429 = vmatpush1.bf16.msra.mxu0 0
        %430 = vmatprep.subr.bf16.mxu0 0
        %431 = vmatpush1.bf16.msra.mxu0 0
        %432 = vmatprep.subr.bf16.mxu0 0
        %433 = vmatpush1.bf16.msra.mxu0 0
        %434 = vmatprep.subr.bf16.mxu0 0
        %435 = vmatpush1.bf16.msra.mxu0 0
        %436 = vmatprep.subr.bf16.mxu0 0
        %437 = vmatpush1.bf16.msra.mxu0 0
        %438 = vmatprep.mubr.bf16.mxu0 0
        %439 = vmatmul.mubr.bf16.gmra.mrb[0].mxu0 %v404
        %v440 = vpop.f32.mrb[0].mxu0
        %v441 = vadd.f32 0.0, %v440
        %v442 = vpop.f32.mrb[0].mxu0
        %v443 = vpop.f32.mrb[0].mxu0
        %v444 = vpop.f32.mrb[0].mxu0
        %445 = vdwg.mxu0
        %v450 = vunpack.c.l.b16 %v227
        %v451 = vunpack.c.l.b16 %v228
        %v452 = vunpack.c.l.b16 %v229
        %v453 = vunpack.c.l.b16 %v230
        %v454 = vpack.c.b16 %v451, %v450
        %v455 = vpack.c.b16 %v453, %v452
        %v459 = vsel %vm255, %v389, 0
        %461 = vmatprep.subr.bf16.mxu0 0
        %462 = vmatpush1.bf16.msra.mxu0 %v454
        %463 = vmatprep.subr.bf16.mxu0 0
        %464 = vmatpush1.bf16.msra.mxu0 %v455
        %465 = vmatprep.subr.bf16.mxu0 0
        %466 = vmatpush1.bf16.msra.mxu0 0
        %467 = vmatprep.subr.bf16.mxu0 0
        %468 = vmatpush1.bf16.msra.mxu0 0
        %469 = vmatprep.subr.bf16.mxu0 0
        %470 = vmatpush1.bf16.msra.mxu0 0
        %471 = vmatprep.subr.bf16.mxu0 0
        %472 = vmatpush1.bf16.msra.mxu0 0
        %473 = vmatprep.subr.bf16.mxu0 0
        %474 = vmatpush1.bf16.msra.mxu0 0
        %475 = vmatprep.subr.bf16.mxu0 0
        %476 = vmatpush1.bf16.msra.mxu0 0
        %477 = vmatprep.subr.bf16.mxu0 0
        %478 = vmatpush1.bf16.msra.mxu0 0
        %479 = vmatprep.subr.bf16.mxu0 0
        %480 = vmatpush1.bf16.msra.mxu0 0
        %481 = vmatprep.subr.bf16.mxu0 0
        %482 = vmatpush1.bf16.msra.mxu0 0
        %483 = vmatprep.subr.bf16.mxu0 0
        %484 = vmatpush1.bf16.msra.mxu0 0
        %485 = vmatprep.subr.bf16.mxu0 0
        %486 = vmatpush1.bf16.msra.mxu0 0
        %487 = vmatprep.subr.bf16.mxu0 0
        %488 = vmatpush1.bf16.msra.mxu0 0
        %489 = vmatprep.subr.bf16.mxu0 0
        %490 = vmatpush1.bf16.msra.mxu0 0
        %491 = vmatprep.subr.bf16.mxu0 0
        %492 = vmatpush1.bf16.msra.mxu0 0
        %493 = vmatprep.mubr.bf16.mxu0 0
        %494 = vmatmul.mubr.bf16.gmra.mrb[0].mxu0 %v459
        %v495 = vpop.f32.mrb[0].mxu0
        %v496 = vadd.f32 %v441, %v495
        %v497 = vpop.f32.mrb[0].mxu0
        %v498 = vpop.f32.mrb[0].mxu0
        %v499 = vpop.f32.mrb[0].mxu0
        %500 = vdwg.mxu0
        %v501 = vlaneseq
        %v502 = vshrl.u32 %v501, 7
        %v503 = vsub.s32 0, %v502
        %v504 = vrot.slane %v220, %v503
        %v505 = vadd.f32 %v496, %v504
        %v506 = vmax.f32 %v505, 0.0
        %v507 = vpack.c.bf16 %v506, %v506
        %v508 = vlaneseq
        %v509 = vshrl.u32 %v508, 7
        %v510 = vsub.s32 0, %v509
        %v511 = vrot.slane %v221, %v510
        %v528 = vunpack.c.l.b16 %v235
        %v529 = vunpack.c.l.b16 %v236
        %v530 = vunpack.c.l.b16 %v237
        %v531 = vunpack.c.l.b16 %v238
        %v532 = vunpack.c.l.b16 %v239
        %v533 = vunpack.c.l.b16 %v240
        %v534 = vunpack.c.l.b16 %v241
        %v535 = vunpack.c.l.b16 %v242
        %v536 = vunpack.c.l.b16 %v243
        %v537 = vunpack.c.l.b16 %v244
        %v538 = vunpack.c.l.b16 %v245
        %v539 = vunpack.c.l.b16 %v246
        %v540 = vunpack.c.l.b16 %v247
        %v541 = vunpack.c.l.b16 %v248
        %v542 = vunpack.c.l.b16 %v249
        %v543 = vunpack.c.l.b16 %v250
        %v544 = vpack.c.b16 %v529, %v528
        %v545 = vpack.c.b16 %v531, %v530
        %v546 = vpack.c.b16 %v533, %v532
        %v547 = vpack.c.b16 %v535, %v534
        %v548 = vpack.c.b16 %v537, %v536
        %v549 = vpack.c.b16 %v539, %v538
        %v550 = vpack.c.b16 %v541, %v540
        %v551 = vpack.c.b16 %v543, %v542
        %560 = vmatprep.subr.bf16.mxu0 0
        %561 = vmatpush1.bf16.msra.mxu0 %v544
        %562 = vmatprep.subr.bf16.mxu0 0
        %563 = vmatpush1.bf16.msra.mxu0 %v545
        %564 = vmatprep.subr.bf16.mxu0 0
        %565 = vmatpush1.bf16.msra.mxu0 %v546
        %566 = vmatprep.subr.bf16.mxu0 0
        %567 = vmatpush1.bf16.msra.mxu0 %v547
        %568 = vmatprep.subr.bf16.mxu0 0
        %569 = vmatpush1.bf16.msra.mxu0 %v548
        %570 = vmatprep.subr.bf16.mxu0 0
        %571 = vmatpush1.bf16.msra.mxu0 %v549
        %572 = vmatprep.subr.bf16.mxu0 0
        %573 = vmatpush1.bf16.msra.mxu0 %v550
        %574 = vmatprep.subr.bf16.mxu0 0
        %575 = vmatpush1.bf16.msra.mxu0 %v551
        %576 = vmatprep.subr.bf16.mxu0 0
        %577 = vmatpush1.bf16.msra.mxu0 0
        %578 = vmatprep.subr.bf16.mxu0 0
        %579 = vmatpush1.bf16.msra.mxu0 0
        %580 = vmatprep.subr.bf16.mxu0 0
        %581 = vmatpush1.bf16.msra.mxu0 0
        %582 = vmatprep.subr.bf16.mxu0 0
        %583 = vmatpush1.bf16.msra.mxu0 0
        %584 = vmatprep.subr.bf16.mxu0 0
        %585 = vmatpush1.bf16.msra.mxu0 0
        %586 = vmatprep.subr.bf16.mxu0 0
        %587 = vmatpush1.bf16.msra.mxu0 0
        %588 = vmatprep.subr.bf16.mxu0 0
        %589 = vmatpush1.bf16.msra.mxu0 0
        %590 = vmatprep.subr.bf16.mxu0 0
        %591 = vmatpush1.bf16.msra.mxu0 0
        %592 = vmatprep.mubr.bf16.mxu0 0
        %593 = vmatmul.mubr.bf16.gmra.mrb[0].mxu0 %v507
        %v594 = vpop.f32.mrb[0].mxu0
        %v595 = vadd.f32 %v511, %v594
        %v596 = vpop.f32.mrb[0].mxu0
        %v597 = vpop.f32.mrb[0].mxu0
        %v598 = vpop.f32.mrb[0].mxu0
        %599 = vdwg.mxu0
        %v600 = vpack.c.bf16 %v595, %v595
        %v601 = vlaneseq
        %v602 = vshrl.u32 %v601, 7
        %v603 = vsub.s32 0, %v602
        %v604 = vrot.slane %v222, %v603
        %v609 = vunpack.c.l.b16 %v251
        %v610 = vunpack.c.l.b16 %v252
        %v611 = vunpack.c.l.b16 %v253
        %v612 = vunpack.c.l.b16 %v254
        %v613 = vpack.c.b16 %v610, %v609
        %v614 = vpack.c.b16 %v612, %v611
        %v618 = vsel %vm255, %v600, 0
        %620 = vmatprep.subr.bf16.mxu0 0
        %621 = vmatpush1.bf16.msra.mxu0 %v613
        %622 = vmatprep.subr.bf16.mxu0 0
        %623 = vmatpush1.bf16.msra.mxu0 %v614
        %624 = vmatprep.subr.bf16.mxu0 0
        %625 = vmatpush1.bf16.msra.mxu0 0
        %626 = vmatprep.subr.bf16.mxu0 0
        %627 = vmatpush1.bf16.msra.mxu0 0
        %628 = vmatprep.subr.bf16.mxu0 0
        %629 = vmatpush1.bf16.msra.mxu0 0
        %630 = vmatprep.subr.bf16.mxu0 0
        %631 = vmatpush1.bf16.msra.mxu0 0
        %632 = vmatprep.subr.bf16.mxu0 0
        %633 = vmatpush1.bf16.msra.mxu0 0
        %634 = vmatprep.subr.bf16.mxu0 0
        %635 = vmatpush1.bf16.msra.mxu0 0
        %636 = vmatprep.subr.bf16.mxu0 0
        %637 = vmatpush1.bf16.msra.mxu0 0
        %638 = vmatprep.subr.bf16.mxu0 0
        %639 = vmatpush1.bf16.msra.mxu0 0
        %640 = vmatprep.subr.bf16.mxu0 0
        %641 = vmatpush1.bf16.msra.mxu0 0
        %642 = vmatprep.subr.bf16.mxu0 0
        %643 = vmatpush1.bf16.msra.mxu0 0
        %644 = vmatprep.subr.bf16.mxu0 0
        %645 = vmatpush1.bf16.msra.mxu0 0
        %646 = vmatprep.subr.bf16.mxu0 0
        %647 = vmatpush1.bf16.msra.mxu0 0
        %648 = vmatprep.subr.bf16.mxu0 0
        %649 = vmatpush1.bf16.msra.mxu0 0
        %650 = vmatprep.subr.bf16.mxu0 0
        %651 = vmatpush1.bf16.msra.mxu0 0
        %652 = vmatprep.mubr.bf16.mxu0 0
        %653 = vmatmul.mubr.bf16.gmra.mrb[0].mxu0 %v618
        %v654 = vpop.f32.mrb[0].mxu0
        %v655 = vadd.f32 %v604, %v654
        %v656 = vpop.f32.mrb[0].mxu0
        %v657 = vpop.f32.mrb[0].mxu0
        %v658 = vpop.f32.mrb[0].mxu0
        %659 = vdwg.mxu0
        %v660 = vadd.f32 %v655, %v280
        %661 = vst.msk [vmem:[%s212] sm:$0xff] %vm255, %v660
        %s662 = sand.u32 %s97, 1
        %s663 = scalar_lea.sflag [#allocation4], %s662
        %s664 = sand.u32 %s97, 1
        %s665 = smul.addr %s664, 8
        %s666 = scalar_lea.vmem [#allocation8], %s665
        // Predicated region
        $region45: #{tpu_custom_call.1} parent=31 // pred_check
          %p667 = pneg %p107
        $region46: #{tpu_custom_call.1} parent=31 // pred_check_branch
          %669 = sbr.rel (%p667) target = $region48
        $region47: #{tpu_custom_call.1} parent=31 // pred_region
          %s671 = ssub.s32 128, 128
          %672 = vsyncadd %s663, %s671
          %s673 = smul.addr %s21, 128
          %s674 = scalar_lea.hbm %s3, %s673
          %s676 = sshll.u32 %s666, 4
          %s677 = int_to_ptr.vmem [resolvable:$true] %s676
          %679 = dma.vmem_to_hbm [thread:$0]  %s677, 128, %s674, %s663
        $region48: #{tpu_custom_call.1} parent=31 // pred_fallthru
          _
      $region32: #{tpu_custom_call.1} parent=5 // pred_fallthru
        _
      %p680 = scmp.le.s32.totalorder 2, %s16
      // Predicated region
      $region49: #{tpu_custom_call.1} parent=5 // pred_check
        %p681 = pneg %p680
      $region50: #{tpu_custom_call.1} parent=5 // pred_check_branch
        %683 = sbr.rel (%p681) target = $region52
      $region51: #{tpu_custom_call.1} parent=5 // pred_region
        %s684 = ssub.s32 %s16, 2
        // Predicated region
        $region53: #{tpu_custom_call.1} parent=51 // pred_check
          %p685 = pneg %p113
        $region54: #{tpu_custom_call.1} parent=51 // pred_check_branch
          %687 = sbr.rel (%p685) target = $region56
        $region55: #{tpu_custom_call.1} parent=51 // pred_region
          %s688 = sand.u32 %s98, 1
          %s689 = scalar_lea.sflag [#allocation4], %s688
          %s690 = sand.u32 %s98, 1
          %s691 = smul.addr %s690, 8
          %s692 = scalar_lea.vmem [#allocation8], %s691
          %693 = dma.done %s689, 128
        $region56: #{tpu_custom_call.1} parent=51 // pred_fallthru
          _
      $region52: #{tpu_custom_call.1} parent=5 // pred_fallthru
        _
    $region6: #{tpu_custom_call.1} parent=1 // loop_footer
      %s20 = sadd.s32 1, %s16
    $region7: #{tpu_custom_call.1} parent=1 // loop_footer_branch
      %15 = sbr.rel target = $region3
    $region8: #{tpu_custom_call.1} parent=1 // loop_exit
      _
    %694 = vsyncpa [#allocation3], 1
    %s695 = scalar_lea.sflag [#allocation3], 1
    %696 = vsyncpa %s695, 1
    %697 = vsyncpa [#allocation6], 1
    %698 = vsyncpa [#allocation4], 1
    %s699 = scalar_lea.sflag [#allocation4], 1
    %700 = vsyncpa %s699, 1

</llo_original>
